<compile_context>
chip_gen: v7x
topology: tpu7x:2x2x1
jax: 0.10.0
libtpu: 0.0.40
codegen_flags: <defaults>
</compile_context>

<pallas_src>
import math

import jax
import jax.numpy as jnp
from jax.experimental import pallas as pl
from jax.experimental.pallas import tpu as pltpu

LANES = 128
SUBLANES = 8


def _make_sse_call(n_rows, n_blocks, n_split, blocks_per_core, tile_rows,
                   needs_mask, bytes_accessed, flops):
    """pallas_call computing per-core partial sums of (pred - target)^2.

    Inputs are (n_rows, 128) arrays (pred, target); output is (n_split, 1) f32
    partial SSEs, one per parallel core slice.
    """

    def kernel(pred_ref, target_ref, out_ref, acc_ref):
        i = pl.program_id(1)

        @pl.when(i == 0)
        def _init():
            acc_ref[...] = jnp.zeros_like(acc_ref)

        # Hot loop: 2 vreg loads per (8,128) slab, pure-VPU math, one (8,128)
        # accumulator read-modify-write per step.  No cross-lane reduce here.
        p = pred_ref[...].astype(jnp.float32)
        t = target_ref[...].astype(jnp.float32)
        d = p - t

        if needs_mask:
            # Logical (unclamped) block handled at this step.  The DMA
            # index_map is clamped to the last valid block, so fully
            # out-of-range blocks re-read valid data and are zeroed here
            # (no double counting, no OOB DMA).
            logical_block = pl.program_id(0) * blocks_per_core + i
            start_row = logical_block * tile_rows
            row_ids = start_row + jax.lax.broadcasted_iota(
                jnp.int32, (tile_rows, LANES), 0)
            d = jnp.where(row_ids < n_rows, d, 0.0)

        sq = d * d
        # Fold the row tile down to a single (8,128) vreg with plain VALU adds
        # (reduction over the leading axis keeps the (8,128) layout; no XLU).
        acc_ref[...] += sq.reshape(tile_rows // SUBLANES, SUBLANES, LANES).sum(axis=0)

        @pl.when(i == pl.num_programs(1) - 1)
        def _finalize():
            # Single cross-lane/sublane reduce of one vreg per core slice.
            out_ref[0, 0] = jnp.sum(acc_ref[...])

    def in_map(c, i):
        blk = jnp.minimum(c * blocks_per_core + i, n_blocks - 1)
        return (blk, 0)

    return pl.pallas_call(
        kernel,
        out_shape=jax.ShapeDtypeStruct((n_split, 1), jnp.float32),
        grid_spec=pltpu.PrefetchScalarGridSpec(
            num_scalar_prefetch=0,
            grid=(n_split, blocks_per_core),
            in_specs=[
                pl.BlockSpec((tile_rows, LANES), in_map),
                pl.BlockSpec((tile_rows, LANES), in_map),
            ],
            out_specs=pl.BlockSpec(
                (1, 1), lambda c, i: (c, 0), memory_space=pltpu.MemorySpace.SMEM
            ),
            scratch_shapes=[pltpu.VMEM((SUBLANES, LANES), jnp.float32)],
        ),
        compiler_params=pltpu.CompilerParams(
            # Leading axis shards the row sweep across both TensorCores on v7x
            # (megacore); it is a cheap serial loop on 1-TC v5e/v6e.
            dimension_semantics=("parallel", "arbitrary"),
            vmem_limit_bytes=48 * 1024 * 1024,
        ),
        cost_estimate=pl.CostEstimate(
            flops=flops, transcendentals=0, bytes_accessed=bytes_accessed),
    )


def _to_lane_rows(x):
    """Flatten to (R, 128). Free (metadata-only) when x.size % 128 == 0."""
    flat = x.reshape(-1)
    pad = (-flat.shape[0]) % LANES
    if pad:
        # TODO(synk): a <=127-element tail forces a pad copy of the flat tensor
        # (zeros cancel in pred - target); callers with 128-multiple sizes
        # avoid this extra HBM pass entirely.
        flat = jnp.pad(flat, (0, pad))
    return flat.reshape(-1, LANES)


def map_loss(pred, target, w, *, prior_mu, prior_sigma, tile_rows=4096):
    """pred/target: same-shape arrays; w: flattened weight tensor (any shape)."""
    assert pred.shape == target.shape, "pred and target must have the same shape"

    def _as_float(x):
        x = jnp.asarray(x)
        if x.dtype in (jnp.float32, jnp.bfloat16):
            return x  # stream native dtype; kernel upcasts to f32
        return x.astype(jnp.float32)

    pred = _as_float(pred)
    target = _as_float(target)
    w = jnp.asarray(w)

    n_pred = pred.size    # MSELoss 'mean' denominator (unpadded count)
    n_w = w.size          # .mean() over all weight elements

    p2 = _to_lane_rows(pred)
    t2 = _to_lane_rows(target)
    n_rows = p2.shape[0]

    # Sublane-aligned row tile, capped at the (rounded-up) array extent.
    tr = min(int(tile_rows), pl.cdiv(n_rows, SUBLANES) * SUBLANES)
    tr = max(SUBLANES, (tr // SUBLANES) * SUBLANES)

    n_blocks = pl.cdiv(n_rows, tr)
    n_split = 2 if n_blocks >= 2 else 1          # v7x 2-TC split; no-op on 1 TC
    blocks_per_core = pl.cdiv(n_blocks, n_split)
    needs_mask = (n_rows % tr != 0) or (n_blocks % n_split != 0)

    bytes_accessed = (p2.size * p2.dtype.itemsize
                      + t2.size * t2.dtype.itemsize + 4 * n_split)
    fn = _make_sse_call(n_rows, n_blocks, n_split, blocks_per_core, tr,
                        needs_mask, bytes_accessed, 3 * n_pred)

    sse = jnp.sum(fn(p2, t2))
    mse = sse / jnp.float32(n_pred)

    # Gaussian prior term over w, computed outside the kernel (possibly millions
    # of params -> never let it bloat VMEM; XLA overlaps it with the kernel).
    # Normal(mu, sigma).log_prob(x) = -(x-mu)^2/(2 sigma^2) - log(sigma) - 0.5*log(2*pi)
    inv_two_var = 1.0 / (2.0 * float(prior_sigma) ** 2)
    log_norm = math.log(float(prior_sigma)) + 0.5 * math.log(2.0 * math.pi)
    ssw = jnp.sum(jnp.square(w.astype(jnp.float32) - jnp.float32(prior_mu)))
    log_prob_mean = (-ssw * jnp.float32(inv_two_var) / jnp.float32(n_w)
                     - jnp.float32(log_norm))

    return mse - log_prob_mean


if __name__ == "__main__":
    # Deterministic "module parameters" for MAPLoss.__init__:
    prior_mu = 0.0
    prior_sigma = 0.5

    key = jax.random.PRNGKey(0)
    k1, k2, k3 = jax.random.split(key, 3)

    # Small shapes: 32 predictions x 128 features, 256 flattened weights.
    pred = jax.random.normal(k1, (32, 128), dtype=jnp.float32)
    target = jax.random.normal(k2, (32, 128), dtype=jnp.float32)
    w = 0.1 * jax.random.normal(k3, (2, 128), dtype=jnp.float32)  # 256 weights

    out = map_loss(pred, target, w, prior_mu=prior_mu, prior_sigma=prior_sigma)
    out = jax.block_until_ready(out)

    # Pure-JAX reference for correctness.
    mse_ref = jnp.mean((pred - target) ** 2)
    logp_ref = (
        -((w - prior_mu) ** 2) / (2.0 * prior_sigma ** 2)
        - math.log(prior_sigma)
        - 0.5 * math.log(2.0 * math.pi)
    )
    ref = mse_ref - jnp.mean(logp_ref)

    assert jnp.allclose(out, ref, rtol=1e-5, atol=1e-5), (out, ref)
    print("KERNEL_OK")
</pallas_src>

<mosaic_0001>
module attributes {stable_mosaic.version = 11 : i64} {
  func.func @kernel(%arg0: i32, %arg1: i32, %arg2: memref<32x128xf32, #tpu.memory_space<vmem>>, %arg3: memref<32x128xf32, #tpu.memory_space<vmem>>, %arg4: memref<1x1xf32, #tpu.memory_space<smem>>, %arg5: memref<8x128xf32, #tpu.memory_space<vmem>>) attributes {dimension_semantics = [#tpu.dimension_semantics<parallel>, #tpu.dimension_semantics<arbitrary>], iteration_bounds = array<i64: 1, 1>, scalar_prefetch = 0 : i64, scratch_operands = 1 : i64, tpu.core_type = #tpu.core_type<tc>, window_params = [{transform_indices = @transform_0, window_bounds = array<i64: 32, 128>}, {transform_indices = @transform_1, window_bounds = array<i64: 32, 128>}, {transform_indices = @transform_2, window_bounds = array<i64: 1, 1>}]} {
    %c0_i32 = arith.constant 0 : i32
    %0 = arith.cmpi eq, %arg1, %c0_i32 : i32
    %1 = arith.extui %0 : i1 to i32
    %c0_i32_0 = arith.constant 0 : i32
    %2 = arith.cmpi ne, %1, %c0_i32_0 : i32
    scf.if %2 {
      %cst_10 = arith.constant 0.000000e+00 : f32
      %15 = vector.broadcast %cst_10 : f32 to vector<8x128xf32>
      %c0_11 = arith.constant 0 : index
      %c0_12 = arith.constant 0 : index
      %16 = vector.load %arg5[%c0_11, %c0_12] : memref<8x128xf32, #tpu.memory_space<vmem>>, vector<8x128xf32>
      tpu.vector_store %arg5[%c0_11, %c0_12], %15 {strides = array<i32>} : memref<8x128xf32, #tpu.memory_space<vmem>>, vector<8x128xf32>,
    } else {
    }
    %c0 = arith.constant 0 : index
    %c0_1 = arith.constant 0 : index
    %3 = vector.load %arg2[%c0, %c0_1] : memref<32x128xf32, #tpu.memory_space<vmem>>, vector<32x128xf32>
    %c0_2 = arith.constant 0 : index
    %c0_3 = arith.constant 0 : index
    %4 = vector.load %arg3[%c0_2, %c0_3] : memref<32x128xf32, #tpu.memory_space<vmem>>, vector<32x128xf32>
    %5 = arith.subf %3, %4 : vector<32x128xf32>
    %6 = arith.mulf %5, %5 : vector<32x128xf32>
    %c0_4 = arith.constant 0 : index
    %c0_5 = arith.constant 0 : index
    %7 = vector.load %arg5[%c0_4, %c0_5] : memref<8x128xf32, #tpu.memory_space<vmem>>, vector<8x128xf32>
    %8 = vector.shape_cast %6 : vector<32x128xf32> to vector<4x8x128xf32>
    %cst = arith.constant dense<0.000000e+00> : vector<8x128xf32>
    %9 = vector.multi_reduction <add>, %8, %cst [0] : vector<4x8x128xf32> to vector<8x128xf32>
    %10 = arith.addf %7, %9 : vector<8x128xf32>
    %c0_6 = arith.constant 0 : index
    %c0_7 = arith.constant 0 : index
    %11 = vector.load %arg5[%c0_6, %c0_7] : memref<8x128xf32, #tpu.memory_space<vmem>>, vector<8x128xf32>
    tpu.vector_store %arg5[%c0_6, %c0_7], %10 {strides = array<i32>} : memref<8x128xf32, #tpu.memory_space<vmem>>, vector<8x128xf32>,
    %c0_i32_8 = arith.constant 0 : i32
    %12 = arith.cmpi eq, %arg1, %c0_i32_8 : i32
    %13 = arith.extui %12 : i1 to i32
    %c0_i32_9 = arith.constant 0 : i32
    %14 = arith.cmpi ne, %13, %c0_i32_9 : i32
    scf.if %14 {
      %c0_10 = arith.constant 0 : index
      %c0_11 = arith.constant 0 : index
      %15 = vector.load %arg5[%c0_10, %c0_11] : memref<8x128xf32, #tpu.memory_space<vmem>>, vector<8x128xf32>
      %16 = vector.shape_cast %15 : vector<8x128xf32> to vector<1x8x128xf32>
      %cst_12 = arith.constant dense<0.000000e+00> : vector<1xf32>
      %17 = vector.multi_reduction <add>, %16, %cst_12 [1, 2] : vector<1x8x128xf32> to vector<1xf32>
      %18 = vector.shape_cast %17 : vector<1xf32> to vector<1x1x1xf32>
      %19 = vector.extract %18[0, 0, 0] : f32 from vector<1x1x1xf32>
      %c0_13 = arith.constant 0 : index
      %c0_14 = arith.constant 0 : index
      %20 = memref.load %arg4[%c0_13, %c0_14] : memref<1x1xf32, #tpu.memory_space<smem>>
      memref.store %19, %arg4[%c0_13, %c0_14] : memref<1x1xf32, #tpu.memory_space<smem>>
    } else {
    }
    return
  }
  func.func @transform_0(%arg0: i32, %arg1: i32) -> (i32, i32) {
    %c1_i32 = arith.constant 1 : i32
    %0 = arith.muli %arg0, %c1_i32 : i32
    %1 = arith.addi %0, %arg1 : i32
    %c0_i32 = arith.constant 0 : i32
    %2 = arith.minsi %1, %c0_i32 : i32
    %c0_i32_0 = arith.constant 0 : i32
    %c0_i32_1 = arith.constant 0 : i32
    return %2, %c0_i32_0 : i32, i32
  }
  func.func @transform_1(%arg0: i32, %arg1: i32) -> (i32, i32) {
    %c1_i32 = arith.constant 1 : i32
    %0 = arith.muli %arg0, %c1_i32 : i32
    %1 = arith.addi %0, %arg1 : i32
    %c0_i32 = arith.constant 0 : i32
    %2 = arith.minsi %1, %c0_i32 : i32
    %c0_i32_0 = arith.constant 0 : i32
    %c0_i32_1 = arith.constant 0 : i32
    return %2, %c0_i32_0 : i32, i32
  }
  func.func @transform_2(%arg0: i32, %arg1: i32) -> (i32, i32) {
    %c0_i32 = arith.constant 0 : i32
    %c0_i32_0 = arith.constant 0 : i32
    return %arg0, %c0_i32 : i32, i32
  }
}

</mosaic_0001>

<llo_original>
// kernel: tpu_custom_call.1
$region0: #{tpu_custom_call.1}
  #allocation0 [shape = 'u32[]', space=smem, size = 0x4, offset = 0x4, fixed_abs, tag = 'smem constant byte address 0x4 - core index']
  #allocation1 [shape = 'u32[144,128]{1,0:T(1,128)}', space=vmem, size = 0x12000, scoped, tag = 'internal scratch']
  #allocation2 [shape = 'f32[8,128]{1,0:T(8,128)}', space=vmem, size = 0x1000, scoped, tag = 'scratch operand']
  %s0 = inlined_call_operand.hbm [shape: f32[32,128], index: 0, kind: input, shape index: {}]
  %s1 = inlined_call_operand.hbm [shape: f32[32,128], index: 1, kind: input, shape index: {}]
  %s2 = inlined_call_operand.hbm [shape: f32[1,1], index: 2, kind: output, shape index: {}]
  %s3 = sld [smem:[#allocation0]]
  $region34: #{tpu_custom_call.1} parent=0
    _
  %s5 = ssub.s32 1, %s3
  %s6 = scalar_select 0, %s5, %s3
  $region1: #{tpu_custom_call.1} parent=0
    #allocation3 [shape = 'u8[16384]{0}', space=vmem, size = 0x4000, scoped, tag = 'input window, operand 0, single buffered']
    #allocation4 [shape = 's32[1]{0}', space=sflag, size = 0x4, scoped, tag = 'scoped memory for tpu_custom_call.1']
    #allocation5 [shape = 's32[1]{0}', space=sflag, size = 0x4, scoped, tag = 'scoped memory for tpu_custom_call.1']
    #allocation6 [shape = 'u8[16384]{0}', space=vmem, size = 0x4000, scoped, tag = 'input window, operand 1, single buffered']
    #allocation7 [shape = 's32[1]{0}', space=sflag, size = 0x4, scoped, tag = 'scoped memory for tpu_custom_call.1']
    #allocation8 [shape = 'u8[512]{0}', space=smem, size = 0x200, scoped, tag = 'output window, operand 0, single buffered']
    %7 = vsyncpa [#allocation4], 0
    %8 = vsyncpa [#allocation7], 0
    %9 = vsyncpa [#allocation5], 0
    // Predicated region
    $region2: #{tpu_custom_call.1} parent=1 // pred_check
      _
    $region3: #{tpu_custom_call.1} parent=1 // pred_check_branch
      %11 = sbr.rel (0) target = $region5
    $region4: #{tpu_custom_call.1} parent=1 // pred_region
      %s12 = sadd.s32 0, 0
      %p13 = scmp.lt.s32.totalorder %s12, 0
      %s14 = scalar_select %p13, %s12, 0
      %s15 = smul.u32 4, %s14
      %s17 = ssub.s32 512, 512
      %18 = vsyncadd [#allocation4], %s17
      %s19 = smul.addr %s15, 128
      %s20 = scalar_lea.hbm %s0, %s19
      %s21 = sshll.u32 [#allocation3], 4
      %s22 = int_to_ptr.vmem [resolvable:$true] %s21
      %27 = dma.hbm_to_vmem [thread:$0]  %s20, 512, %s22, [#allocation4], 128, 128, 8
    $region5: #{tpu_custom_call.1} parent=1 // pred_fallthru
      _
    // Predicated region
    $region6: #{tpu_custom_call.1} parent=1 // pred_check
      _
    $region7: #{tpu_custom_call.1} parent=1 // pred_check_branch
      %29 = sbr.rel (0) target = $region9
    $region8: #{tpu_custom_call.1} parent=1 // pred_region
      %s30 = sadd.s32 0, 0
      %p31 = scmp.lt.s32.totalorder %s30, 0
      %s32 = scalar_select %p31, %s30, 0
      %s33 = smul.u32 4, %s32
      %s35 = ssub.s32 512, 512
      %36 = vsyncadd [#allocation7], %s35
      %s37 = smul.addr %s33, 128
      %s38 = scalar_lea.hbm %s1, %s37
      %s39 = sshll.u32 [#allocation6], 4
      %s40 = int_to_ptr.vmem [resolvable:$true] %s39
      %45 = dma.hbm_to_vmem [thread:$0]  %s38, 512, %s40, [#allocation7], 128, 128, 8
    $region9: #{tpu_custom_call.1} parent=1 // pred_fallthru
      _
    // Predicated region
    $region10: #{tpu_custom_call.1} parent=1 // pred_check
      _
    $region11: #{tpu_custom_call.1} parent=1 // pred_check_branch
      %47 = sbr.rel (0) target = $region13
    $region12: #{tpu_custom_call.1} parent=1 // pred_region
      %48 = dma.done [#allocation4], 512
    $region13: #{tpu_custom_call.1} parent=1 // pred_fallthru
      _
    // Predicated region
    $region14: #{tpu_custom_call.1} parent=1 // pred_check
      _
    $region15: #{tpu_custom_call.1} parent=1 // pred_check_branch
      %50 = sbr.rel (0) target = $region17
    $region16: #{tpu_custom_call.1} parent=1 // pred_region
      %51 = dma.done [#allocation7], 512
    $region17: #{tpu_custom_call.1} parent=1 // pred_fallthru
      _
    %s52 = sadd.s32 0, 0
    %p53 = scmp.lt.s32.totalorder %s52, 0
    %s54 = scalar_select %p53, %s52, 0
    %s55 = smul.u32 4, %s54
    %s56 = sadd.s32 0, 0
    %p57 = scmp.lt.s32.totalorder %s56, 0
    %s58 = scalar_select %p57, %s56, 0
    %s59 = smul.u32 4, %s58
    %p60 = scmp.eq.s32.totalorder 0, 0
    // Predicated region
    $region18: #{tpu_custom_call.1} parent=1 // pred_check
      %p61 = pneg %p60
    $region19: #{tpu_custom_call.1} parent=1 // pred_check_branch
      %63 = sbr.rel (%p61) target = $region21
    $region20: #{tpu_custom_call.1} parent=1 // pred_region
      %64 = vst [vmem:[#allocation2] sm:$0xff] 0.0
    $region21: #{tpu_custom_call.1} parent=1 // pred_fallthru
      _
    %v65 = vld [vmem:[#allocation3] sm:$0xff]
    %v66 = vld [vmem:[#allocation3 + $0x8] sm:$0xff]
    %v67 = vld [vmem:[#allocation3 + $0x10] sm:$0xff]
    %v68 = vld [vmem:[#allocation3 + $0x18] sm:$0xff]
    %v69 = vld [vmem:[#allocation6] sm:$0xff]
    %v70 = vld [vmem:[#allocation6 + $0x8] sm:$0xff]
    %v71 = vld [vmem:[#allocation6 + $0x10] sm:$0xff]
    %v72 = vld [vmem:[#allocation6 + $0x18] sm:$0xff]
    %v73 = vsub.f32 %v65, %v69
    %v74 = vsub.f32 %v66, %v70
    %v75 = vsub.f32 %v67, %v71
    %v76 = vsub.f32 %v68, %v72
    %v77 = vmul.f32 %v73, %v73
    %v78 = vmul.f32 %v74, %v74
    %v79 = vmul.f32 %v75, %v75
    %v80 = vmul.f32 %v76, %v76
    %v81 = vld [vmem:[#allocation2] sm:$0xff]
    %v82 = vadd.f32 %v77, %v78
    %v83 = vadd.f32 %v82, %v79
    %v84 = vadd.f32 %v83, %v80
    %v85 = vadd.f32 %v81, %v84
    %86 = vst [vmem:[#allocation2] sm:$0xff] %v85
    // Predicated region
    $region22: #{tpu_custom_call.1} parent=1 // pred_check
      %p87 = pneg %p60
    $region23: #{tpu_custom_call.1} parent=1 // pred_check_branch
      %89 = sbr.rel (%p87) target = $region25
    $region24: #{tpu_custom_call.1} parent=1 // pred_region
      %v90 = vld [vmem:[#allocation2] sm:$0xff]
      %91 = vadd.xlane.f32.xlu0 %v90
      %v92 = vpop.xlane.xlu0 %91
      %v93 = vrot.slane %v92, 4
      %v94 = vadd.f32 %v92, %v93
      %v95 = vrot.slane %v94, 2
      %v96 = vadd.f32 %v94, %v95
      %v97 = vrot.slane %v96, 1
      %v98 = vadd.f32 %v96, %v97
      %s99 = vtos %v98
      %s100 = scalar_lea.smem [#allocation8], 0
      %101 = sst [smem:[%s100]] %s99
    $region25: #{tpu_custom_call.1} parent=1 // pred_fallthru
      _
    // Predicated region
    $region26: #{tpu_custom_call.1} parent=1 // pred_check
      _
    $region27: #{tpu_custom_call.1} parent=1 // pred_check_branch
      %103 = sbr.rel (0) target = $region29
    $region28: #{tpu_custom_call.1} parent=1 // pred_region
      %s105 = ssub.s32 16, 16
      %106 = vsyncadd [#allocation5], %s105
      %109 = dma.smem_to_hbm [#allocation8], 16, %s2, [#allocation5]
    $region29: #{tpu_custom_call.1} parent=1 // pred_fallthru
      _
    // Predicated region
    $region30: #{tpu_custom_call.1} parent=1 // pred_check
      _
    $region31: #{tpu_custom_call.1} parent=1 // pred_check_branch
      %111 = sbr.rel (0) target = $region33
    $region32: #{tpu_custom_call.1} parent=1 // pred_region
      %112 = dma.done [#allocation5], 16
    $region33: #{tpu_custom_call.1} parent=1 // pred_fallthru
      _
    %113 = sfence
    %114 = vsyncpa [#allocation4], 1
    %115 = vsyncpa [#allocation7], 1
    %116 = vsyncpa [#allocation5], 1

</llo_original>
